<compile_context>
chip_gen: v7x
topology: tpu7x:2x2x1
jax: 0.10.0
libtpu: 0.0.40
codegen_flags: <defaults>
</compile_context>

<pallas_src>
import functools

import jax
import jax.numpy as jnp
from jax.experimental import pallas as pl
from jax.experimental.pallas import tpu as pltpu


def _round_up(n, m):
    return ((n + m - 1) // m) * m


def _device_kind():
    try:
        return jax.devices()[0].device_kind.lower()
    except Exception:
        return ""


def _elementwise_dtype():
    """bf16 element-wise only where the VPU has a bf16 path (v6e / v7x)."""
    kind = _device_kind()
    if "v6" in kind or "v7" in kind:
        return jnp.bfloat16
    return jnp.float32


def _min_grid_steps():
    """v7x has 2 TensorCores; keep >= 2 grid steps so both stay busy."""
    return 2 if "v7" in _device_kind() else 1


# ----------------------------- Pallas kernel --------------------------------
def dssm_fused_kernel(x_ref, w1_ref, b1_ref, w2_ref, b2_ref, y_ref, *,
                      inv_temperature, emb_rows, ew_dtype):
    # Transposed dataflow: batch on the 128-lane axis everywhere.
    #   x      : (in_dim, TB)  bf16
    #   w1 (T) : (h0, in_dim)  bf16     -> h = W1^T x : (h0, TB)
    #   w2 (T) : (2*emb, h0)   bf16     -> e = W2^T h : (2*emb, TB)
    x = x_ref[...]
    h = jnp.dot(w1_ref[...], x, preferred_element_type=ew_dtype)
    h = jnp.maximum(h + b1_ref[...].astype(ew_dtype), 0.0)          # (h0, TB)
    e = jnp.dot(w2_ref[...], h.astype(jnp.bfloat16),
                preferred_element_type=ew_dtype)
    e = jnp.maximum(e + b2_ref[...].astype(ew_dtype), 0.0)          # (2*emb, TB)

    # Epilogue: embeddings are adjacent row blocks -> no transpose needed,
    # reductions run over sublanes, (1, TB) store stays lane-dense.
    ue = e[:emb_rows, :]                                             # (emb, TB)
    ie = e[emb_rows:, :]                                             # (emb, TB)

    # cosine similarity (torch.cosine_similarity, eps=1e-8):
    #   dot / (max(||u||,eps)*max(||i||,eps))
    #     == dot * rsqrt(max(su, eps^2)) * rsqrt(max(si, eps^2))
    # products in ew_dtype (bf16 on v6e/v7x); accumulation/rsqrt in f32.
    dot = jnp.sum((ue * ie).astype(jnp.float32), axis=0, keepdims=True)
    su = jnp.sum((ue * ue).astype(jnp.float32), axis=0, keepdims=True)
    si = jnp.sum((ie * ie).astype(jnp.float32), axis=0, keepdims=True)
    eps2 = 1e-16
    cos = dot * jax.lax.rsqrt(jnp.maximum(su, eps2)) \
              * jax.lax.rsqrt(jnp.maximum(si, eps2))

    # temperature folded into one multiply; sigmoid on EUP; lane-dense store.
    y_ref[...] = jax.nn.sigmoid(cos * inv_temperature)


# ----------------------------- wrapper ---------------------------------------
def pack_dssm_params(params):
    """Pack both tower MLPs into block-diagonal, pre-transposed fused weights.

    Row layout after packing (transposed dataflow, batch on lanes):
      layer-1 rows: [user_h0 (64) | item_h0 (64)]   -> W1^T : (128, in_dim)
      layer-2 rows: [user_emb (32) | item_emb (32)] -> W2^T : (64, 128)
    Block-diagonal zeros guarantee no leakage between the towers through
    bias + ReLU, and the adjacent embedding rows keep the epilogue minimal.
    """
    uw1, ub1, uw2, ub2 = (params[k] for k in ("uw1", "ub1", "uw2", "ub2"))
    iw1, ib1, iw2, ib2 = (params[k] for k in ("iw1", "ib1", "iw2", "ib2"))
    ud, uh0 = uw1.shape
    idim, ih0 = iw1.shape
    uh1 = uw2.shape[1]
    ih1 = iw2.shape[1]
    assert uh1 == ih1, "cosine similarity requires equal embedding dims"

    w1t = jnp.zeros((uh0 + ih0, ud + idim), jnp.float32)
    w1t = w1t.at[:uh0, :ud].set(uw1.T).at[uh0:, ud:].set(iw1.T)      # (128, 64)
    b1 = jnp.concatenate([ub1, ib1], axis=1).reshape(-1, 1)          # (128, 1)

    w2t = jnp.zeros((uh1 + ih1, uh0 + ih0), jnp.float32)
    w2t = w2t.at[:uh1, :uh0].set(uw2.T).at[uh1:, uh0:].set(iw2.T)    # (64, 128)
    b2 = jnp.concatenate([ub2, ib2], axis=1).reshape(-1, 1)          # (64, 1)

    return {
        "w1t": w1t.astype(jnp.bfloat16),   # MXU operands in bf16
        "b1": b1,                          # biases stay f32 (cast in-kernel if bf16 path)
        "w2t": w2t.astype(jnp.bfloat16),
        "b2": b2,
        "emb_rows": uh1,
    }


def dssm_forward_pallas(user_in, item_in, packed, temperature=1.0, tile_b=4096):
    """user_in: [B, user_dims], item_in: [B, item_dims] -> y: [B] (sigmoid scores)."""
    B = user_in.shape[0]
    # Transposed input: (in_dim, B), batch on the lane axis end-to-end.
    x = jnp.concatenate([user_in, item_in], axis=1).T.astype(jnp.bfloat16)
    in_dim = x.shape[0]

    # --- batch tile selection ---
    # * multiple of 128 (lane-dense tiles / output row)
    # * capped at 4096 (safe vs v7x's 32 MiB scoped VMEM; v5e/v6e have slack)
    # * shrunk for small batches so we don't over-pad
    # * on v7x, shrunk so the grid has >= 2 steps (one per TensorCore)
    tile_b = max(128, _round_up(min(tile_b, 4096), 128))
    min_steps = _min_grid_steps()
    tile_cap = max(128, _round_up(-(-B // min_steps), 128))
    tile_b = min(tile_b, tile_cap)
    nsteps = -(-B // tile_b)
    b_pad = nsteps * tile_b
    if b_pad != B:
        x = jnp.pad(x, ((0, 0), (0, b_pad - B)))

    w1t, b1, w2t, b2 = packed["w1t"], packed["b1"], packed["w2t"], packed["b2"]
    h0 = w1t.shape[0]
    e_rows = w2t.shape[0]

    kernel = functools.partial(
        dssm_fused_kernel,
        inv_temperature=float(1.0 / temperature),
        emb_rows=packed["emb_rows"],
        ew_dtype=_elementwise_dtype(),
    )

    y = pl.pallas_call(
        kernel,
        grid=(nsteps,),
        in_specs=[
            # streamed, batch-tiled input (double-buffered by Pallas)
            pl.BlockSpec((in_dim, tile_b), lambda i: (0, i)),
            # weights / biases: constant index map -> VMEM-resident, no re-fetch
            pl.BlockSpec((h0, in_dim), lambda i: (0, 0)),
            pl.BlockSpec((h0, 1), lambda i: (0, 0)),
            pl.BlockSpec((e_rows, h0), lambda i: (0, 0)),
            pl.BlockSpec((e_rows, 1), lambda i: (0, 0)),
        ],
        # lane-dense output row per grid step (batch on the 128-lane axis)
        out_specs=pl.BlockSpec((None, 1, tile_b), lambda i: (i, 0, 0)),
        out_shape=jax.ShapeDtypeStruct((nsteps, 1, tile_b), jnp.float32),
        compiler_params=pltpu.CompilerParams(
            dimension_semantics=("parallel",),   # v7x: shard batch over both TCs
        ),
    )(x, w1t, b1, w2t, b2)
    return y.reshape(-1)[:B]


# ----------------------------- reference & params ----------------------------
def dssm_forward_reference(user_in, item_in, params, temperature=1.0):
    """Unfused f32 reference (matches the torch forward, sim_func='cosine')."""
    def tower(z, w1, b1, w2, b2):
        h = jnp.maximum(z @ w1 + b1, 0.0)
        return jnp.maximum(h @ w2 + b2, 0.0)

    ue = tower(user_in, params["uw1"], params["ub1"], params["uw2"], params["ub2"])
    ie = tower(item_in, params["iw1"], params["ib1"], params["iw2"], params["ib2"])
    eps = 1e-8
    dot = jnp.sum(ue * ie, axis=1)
    un = jnp.maximum(jnp.sqrt(jnp.sum(ue * ue, axis=1)), eps)
    inr = jnp.maximum(jnp.sqrt(jnp.sum(ie * ie, axis=1)), eps)
    return jax.nn.sigmoid(dot / (un * inr) / temperature)


def make_params(key, user_dims, item_dims, user_hidden, item_hidden):
    ks = jax.random.split(key, 8)

    def lin(k, fan_in, fan_out):
        scale = 1.0 / jnp.sqrt(fan_in)
        return jax.random.uniform(k, (fan_in, fan_out), jnp.float32, -scale, scale)

    return {
        "uw1": lin(ks[0], user_dims, user_hidden[0]),
        "ub1": jnp.zeros((1, user_hidden[0]), jnp.float32),
        "uw2": lin(ks[1], user_hidden[0], user_hidden[1]),
        "ub2": jnp.zeros((1, user_hidden[1]), jnp.float32),
        "iw1": lin(ks[2], item_dims, item_hidden[0]),
        "ib1": jnp.zeros((1, item_hidden[0]), jnp.float32),
        "iw2": lin(ks[3], item_hidden[0], item_hidden[1]),
        "ib2": jnp.zeros((1, item_hidden[1]), jnp.float32),
    }


# ----------------------------------- main ------------------------------------
if __name__ == "__main__":
    key = jax.random.PRNGKey(0)
    B = 8
    EMB = 16  # embed_dim per sparse feature

    # user features: user_id (vocab 100), user_age (vocab 10)
    # item features: item_id (vocab 200), item_cate (vocab 20)
    feat_cfg = {"user_id": 100, "user_age": 10, "item_id": 200, "item_cate": 20}
    user_feats = ["user_id", "user_age"]
    item_feats = ["item_id", "item_cate"]

    keys = jax.random.split(key, 16)
    tables = {
        name: 0.01 * jax.random.normal(keys[i], (vocab, EMB), jnp.float32)
        for i, (name, vocab) in enumerate(feat_cfg.items())
    }
    x = {
        name: jax.random.randint(keys[8 + i], (B,), 0, vocab, jnp.int32)
        for i, (name, vocab) in enumerate(feat_cfg.items())
    }

    # EmbeddingLayer(..., squeeze_dim=True): lookup + concat -> [B, sum(embed_dim)]
    user_in = jnp.concatenate([jnp.take(tables[n], x[n], axis=0) for n in user_feats], axis=1)
    item_in = jnp.concatenate([jnp.take(tables[n], x[n], axis=0) for n in item_feats], axis=1)

    # user_params / item_params: {"dims": [64, 32], "activation": "relu", "dropout": 0.0}
    # (dropout is a no-op at inference; output_layer=False)
    params = make_params(jax.random.PRNGKey(42),
                         user_in.shape[1], item_in.shape[1], (64, 32), (64, 32))
    packed = pack_dssm_params(params)

    y = dssm_forward_pallas(user_in, item_in, packed, temperature=1.0)
    jax.block_until_ready(y)
    assert y.shape == (B,)

    # Unit test against the unfused f32 reference (block-diagonal packing, bf16
    # matmul operands and bf16 element-wise on v6e/v7x must not perturb scores).
    y_ref = dssm_forward_reference(user_in, item_in, params, temperature=1.0)
    err = float(jnp.max(jnp.abs(y - y_ref)))
    assert err < 5e-2, f"mismatch vs unfused f32 reference: {err}"

    print("KERNEL_OK")
</pallas_src>

<mosaic_0001>
module attributes {stable_mosaic.version = 11 : i64} {
  func.func @dssm_fused_kernel(%arg0: i32, %arg1: memref<64x128xbf16, #tpu.memory_space<vmem>>, %arg2: memref<128x64xbf16, #tpu.memory_space<vmem>>, %arg3: memref<128x1xf32, #tpu.memory_space<vmem>>, %arg4: memref<64x128xbf16, #tpu.memory_space<vmem>>, %arg5: memref<64x1xf32, #tpu.memory_space<vmem>>, %arg6: memref<1x1x128xf32, #tpu.memory_space<vmem>>) attributes {dimension_semantics = [#tpu.dimension_semantics<parallel>], iteration_bounds = array<i64: 1>, scalar_prefetch = 0 : i64, scratch_operands = 0 : i64, tpu.core_type = #tpu.core_type<tc>, window_params = [{transform_indices = @transform_0, window_bounds = array<i64: 64, 128>}, {pipeline_mode = #tpu.pipeline_mode<synchronous>, transform_indices = @transform_1, window_bounds = array<i64: 128, 64>}, {pipeline_mode = #tpu.pipeline_mode<synchronous>, transform_indices = @transform_2, window_bounds = array<i64: 128, 1>}, {pipeline_mode = #tpu.pipeline_mode<synchronous>, transform_indices = @transform_3, window_bounds = array<i64: 64, 128>}, {pipeline_mode = #tpu.pipeline_mode<synchronous>, transform_indices = @transform_4, window_bounds = array<i64: 64, 1>}, {transform_indices = @transform_5, window_bounds = array<i64: 1, 1, 128>}]} {
    %c0 = arith.constant 0 : index
    %c0_0 = arith.constant 0 : index
    %0 = vector.load %arg1[%c0, %c0_0] : memref<64x128xbf16, #tpu.memory_space<vmem>>, vector<64x128xbf16>
    %c0_1 = arith.constant 0 : index
    %c0_2 = arith.constant 0 : index
    %1 = vector.load %arg2[%c0_1, %c0_2] : memref<128x64xbf16, #tpu.memory_space<vmem>>, vector<128x64xbf16>
    %cst = arith.constant dense<0.000000e+00> : vector<128x128xf32>
    %2 = tpu.matmul %1, %0, %cst {dimension_numbers = #tpu.dot_dimension_numbers<[1], [0], [0], [1], [0, 0, 1, 1], [], []>} : vector<128x64xbf16>, vector<64x128xbf16>, vector<128x128xf32> -> vector<128x128xf32>
    %c0_3 = arith.constant 0 : index
    %c0_4 = arith.constant 0 : index
    %3 = vector.load %arg3[%c0_3, %c0_4] : memref<128x1xf32, #tpu.memory_space<vmem>>, vector<128x1xf32>
    %4 = vector.broadcast %3 : vector<128x1xf32> to vector<128x128xf32>
    %5 = arith.addf %2, %4 : vector<128x128xf32>
    %cst_5 = arith.constant 0.000000e+00 : f32
    %6 = vector.broadcast %cst_5 : f32 to vector<128x128xf32>
    %7 = arith.maximumf %5, %6 : vector<128x128xf32>
    %c0_6 = arith.constant 0 : index
    %c0_7 = arith.constant 0 : index
    %8 = vector.load %arg4[%c0_6, %c0_7] : memref<64x128xbf16, #tpu.memory_space<vmem>>, vector<64x128xbf16>
    %9 = arith.truncf %7 : vector<128x128xf32> to vector<128x128xbf16>
    %cst_8 = arith.constant dense<0.000000e+00> : vector<64x128xf32>
    %10 = tpu.matmul %8, %9, %cst_8 {dimension_numbers = #tpu.dot_dimension_numbers<[1], [0], [0], [1], [0, 0, 1, 1], [], []>} : vector<64x128xbf16>, vector<128x128xbf16>, vector<64x128xf32> -> vector<64x128xf32>
    %c0_9 = arith.constant 0 : index
    %c0_10 = arith.constant 0 : index
    %11 = vector.load %arg5[%c0_9, %c0_10] : memref<64x1xf32, #tpu.memory_space<vmem>>, vector<64x1xf32>
    %12 = vector.broadcast %11 : vector<64x1xf32> to vector<64x128xf32>
    %13 = arith.addf %10, %12 : vector<64x128xf32>
    %cst_11 = arith.constant 0.000000e+00 : f32
    %14 = vector.broadcast %cst_11 : f32 to vector<64x128xf32>
    %15 = arith.maximumf %13, %14 : vector<64x128xf32>
    %16 = vector.extract_strided_slice %15 {offsets = [0, 0], sizes = [32, 128], strides = [1, 1]} : vector<64x128xf32> to vector<32x128xf32>
    %17 = vector.extract_strided_slice %15 {offsets = [32, 0], sizes = [32, 128], strides = [1, 1]} : vector<64x128xf32> to vector<32x128xf32>
    %18 = arith.mulf %16, %17 : vector<32x128xf32>
    %cst_12 = arith.constant dense<0.000000e+00> : vector<128xf32>
    %19 = vector.multi_reduction <add>, %18, %cst_12 [0] : vector<32x128xf32> to vector<128xf32>
    %20 = vector.shape_cast %19 : vector<128xf32> to vector<1x128xf32>
    %21 = arith.mulf %16, %16 : vector<32x128xf32>
    %cst_13 = arith.constant dense<0.000000e+00> : vector<128xf32>
    %22 = vector.multi_reduction <add>, %21, %cst_13 [0] : vector<32x128xf32> to vector<128xf32>
    %23 = vector.shape_cast %22 : vector<128xf32> to vector<1x128xf32>
    %24 = arith.mulf %17, %17 : vector<32x128xf32>
    %cst_14 = arith.constant dense<0.000000e+00> : vector<128xf32>
    %25 = vector.multi_reduction <add>, %24, %cst_14 [0] : vector<32x128xf32> to vector<128xf32>
    %26 = vector.shape_cast %25 : vector<128xf32> to vector<1x128xf32>
    %cst_15 = arith.constant 1.000000e-16 : f32
    %27 = vector.broadcast %cst_15 : f32 to vector<1x128xf32>
    %28 = arith.maximumf %23, %27 : vector<1x128xf32>
    %29 = math.rsqrt %28 : vector<1x128xf32>
    %30 = arith.mulf %20, %29 : vector<1x128xf32>
    %cst_16 = arith.constant 1.000000e-16 : f32
    %31 = vector.broadcast %cst_16 : f32 to vector<1x128xf32>
    %32 = arith.maximumf %26, %31 : vector<1x128xf32>
    %33 = math.rsqrt %32 : vector<1x128xf32>
    %34 = arith.mulf %30, %33 : vector<1x128xf32>
    %cst_17 = arith.constant 1.000000e+00 : f32
    %35 = vector.broadcast %cst_17 : f32 to vector<1x128xf32>
    %36 = arith.mulf %34, %35 : vector<1x128xf32>
    %37 = arith.negf %36 : vector<1x128xf32>
    %38 = math.exp %37 : vector<1x128xf32>
    %cst_18 = arith.constant 1.000000e+00 : f32
    %39 = vector.broadcast %cst_18 : f32 to vector<1x128xf32>
    %40 = arith.addf %39, %38 : vector<1x128xf32>
    %41 = arith.divf %39, %40 : vector<1x128xf32>
    %c0_19 = arith.constant 0 : index
    %c0_20 = arith.constant 0 : index
    %c0_21 = arith.constant 0 : index
    %42 = vector.load %arg6[%c0_19, %c0_20, %c0_21] : memref<1x1x128xf32, #tpu.memory_space<vmem>>, vector<1x1x128xf32>
    %43 = vector.shape_cast %42 : vector<1x1x128xf32> to vector<1x128xf32>
    %44 = vector.shape_cast %41 : vector<1x128xf32> to vector<1x1x128xf32>
    tpu.vector_store %arg6[%c0_19, %c0_20, %c0_21], %44 {strides = array<i32>} : memref<1x1x128xf32, #tpu.memory_space<vmem>>, vector<1x1x128xf32>,
    return
  }
  func.func @transform_0(%arg0: i32) -> (i32, i32) {
    %c0_i32 = arith.constant 0 : i32
    %c0_i32_0 = arith.constant 0 : i32
    return %c0_i32, %arg0 : i32, i32
  }
  func.func @transform_1(%arg0: i32) -> (i32, i32) {
    %c0_i32 = arith.constant 0 : i32
    %c0_i32_0 = arith.constant 0 : i32
    %c0_i32_1 = arith.constant 0 : i32
    return %c0_i32, %c0_i32_0 : i32, i32
  }
  func.func @transform_2(%arg0: i32) -> (i32, i32) {
    %c0_i32 = arith.constant 0 : i32
    %c0_i32_0 = arith.constant 0 : i32
    %c0_i32_1 = arith.constant 0 : i32
    return %c0_i32, %c0_i32_0 : i32, i32
  }
  func.func @transform_3(%arg0: i32) -> (i32, i32) {
    %c0_i32 = arith.constant 0 : i32
    %c0_i32_0 = arith.constant 0 : i32
    %c0_i32_1 = arith.constant 0 : i32
    return %c0_i32, %c0_i32_0 : i32, i32
  }
  func.func @transform_4(%arg0: i32) -> (i32, i32) {
    %c0_i32 = arith.constant 0 : i32
    %c0_i32_0 = arith.constant 0 : i32
    %c0_i32_1 = arith.constant 0 : i32
    return %c0_i32, %c0_i32_0 : i32, i32
  }
  func.func @transform_5(%arg0: i32) -> (i32, i32, i32) {
    %c0_i32 = arith.constant 0 : i32
    %c0_i32_0 = arith.constant 0 : i32
    %c0_i32_1 = arith.constant 0 : i32
    return %arg0, %c0_i32, %c0_i32_0 : i32, i32, i32
  }
}

</mosaic_0001>

<llo_original>
// kernel: tpu_custom_call.1
$region0: #{tpu_custom_call.1}
  #allocation0 [shape = 'u32[]', space=smem, size = 0x4, offset = 0x4, fixed_abs, tag = 'smem constant byte address 0x4 - core index']
  #allocation1 [shape = 'u32[144,128]{1,0:T(1,128)}', space=vmem, size = 0x12000, scoped, tag = 'internal scratch']
  %s0 = inlined_call_operand.vmem [shape: bf16[64,128], index: 0, kind: input, shape index: {}]
  %s1 = inlined_call_operand.vmem [shape: bf16[128,64], index: 1, kind: input, shape index: {}]
  %s2 = inlined_call_operand.vmem [shape: f32[128,1], index: 2, kind: input, shape index: {}]
  %s3 = inlined_call_operand.vmem [shape: bf16[64,128], index: 3, kind: input, shape index: {}]
  %s4 = inlined_call_operand.vmem [shape: f32[64,1], index: 4, kind: input, shape index: {}]
  %s5 = inlined_call_operand.hbm [shape: f32[1,1,128], index: 5, kind: output, shape index: {}]
  %s6 = sld [smem:[#allocation0]]
  $region30: #{tpu_custom_call.1} parent=0
    _
  %s8 = ssub.s32 1, %s6
  %s9 = scalar_select 0, %s8, %s6
  $region1: #{tpu_custom_call.1} parent=0
    #allocation2 [shape = 'u8[512]{0}', space=vmem, size = 0x400, scoped, tag = 'output window, operand 0, single buffered']
    #allocation3 [shape = 's32[1]{0}', space=sflag, size = 0x4, scoped, tag = 'scoped memory for tpu_custom_call.1']
    %10 = vsyncpa [#allocation3], 0
    // Predicated region
    $region2: #{tpu_custom_call.1} parent=1 // pred_check
      _
    $region3: #{tpu_custom_call.1} parent=1 // pred_check_branch
      %12 = sbr.rel (0) target = $region5
    $region4: #{tpu_custom_call.1} parent=1 // pred_region
      _
    $region5: #{tpu_custom_call.1} parent=1 // pred_fallthru
      _
    // Predicated region
    $region6: #{tpu_custom_call.1} parent=1 // pred_check
      _
    $region7: #{tpu_custom_call.1} parent=1 // pred_check_branch
      %14 = sbr.rel (0) target = $region9
    $region8: #{tpu_custom_call.1} parent=1 // pred_region
      _
    $region9: #{tpu_custom_call.1} parent=1 // pred_fallthru
      _
    // Predicated region
    $region10: #{tpu_custom_call.1} parent=1 // pred_check
      _
    $region11: #{tpu_custom_call.1} parent=1 // pred_check_branch
      %16 = sbr.rel (0) target = $region13
    $region12: #{tpu_custom_call.1} parent=1 // pred_region
      _
    $region13: #{tpu_custom_call.1} parent=1 // pred_fallthru
      _
    // Predicated region
    $region14: #{tpu_custom_call.1} parent=1 // pred_check
      _
    $region15: #{tpu_custom_call.1} parent=1 // pred_check_branch
      %18 = sbr.rel (0) target = $region17
    $region16: #{tpu_custom_call.1} parent=1 // pred_region
      _
    $region17: #{tpu_custom_call.1} parent=1 // pred_fallthru
      _
    // Predicated region
    $region18: #{tpu_custom_call.1} parent=1 // pred_check
      _
    $region19: #{tpu_custom_call.1} parent=1 // pred_check_branch
      %20 = sbr.rel (0) target = $region21
    $region20: #{tpu_custom_call.1} parent=1 // pred_region
      _
    $region21: #{tpu_custom_call.1} parent=1 // pred_fallthru
      _
    %v22 = vld [vmem:[%s0] sm:$0xf]
    %v23 = vld [vmem:[%s0 + $0x4] sm:$0xf]
    %v24 = vld [vmem:[%s0 + $0x8] sm:$0xf]
    %v25 = vld [vmem:[%s0 + $0xc] sm:$0xf]
    %v26 = vld [vmem:[%s0 + $0x10] sm:$0xf]
    %v27 = vld [vmem:[%s0 + $0x14] sm:$0xf]
    %v28 = vld [vmem:[%s0 + $0x18] sm:$0xf]
    %v29 = vld [vmem:[%s0 + $0x1c] sm:$0xf]
    %v30 = vld [vmem:[%s1] sm:$0xf]
    %v31 = vld [vmem:[%s1 + $0x4] sm:$0xf]
    %v32 = vld [vmem:[%s1 + $0x8] sm:$0xf]
    %v33 = vld [vmem:[%s1 + $0xc] sm:$0xf]
    %v34 = vld [vmem:[%s1 + $0x10] sm:$0xf]
    %v35 = vld [vmem:[%s1 + $0x14] sm:$0xf]
    %v36 = vld [vmem:[%s1 + $0x18] sm:$0xf]
    %v37 = vld [vmem:[%s1 + $0x1c] sm:$0xf]
    %v38 = vld [vmem:[%s1 + $0x20] sm:$0xf]
    %v39 = vld [vmem:[%s1 + $0x24] sm:$0xf]
    %v40 = vld [vmem:[%s1 + $0x28] sm:$0xf]
    %v41 = vld [vmem:[%s1 + $0x2c] sm:$0xf]
    %v42 = vld [vmem:[%s1 + $0x30] sm:$0xf]
    %v43 = vld [vmem:[%s1 + $0x34] sm:$0xf]
    %v44 = vld [vmem:[%s1 + $0x38] sm:$0xf]
    %v45 = vld [vmem:[%s1 + $0x3c] sm:$0xf]
    %v46 = vld [vmem:[%s2] sm:$0xff]
    %v47 = vld [vmem:[%s2 + $0x8] sm:$0xff]
    %v48 = vld [vmem:[%s2 + $0x10] sm:$0xff]
    %v49 = vld [vmem:[%s2 + $0x18] sm:$0xff]
    %v50 = vld [vmem:[%s2 + $0x20] sm:$0xff]
    %v51 = vld [vmem:[%s2 + $0x28] sm:$0xff]
    %v52 = vld [vmem:[%s2 + $0x30] sm:$0xff]
    %v53 = vld [vmem:[%s2 + $0x38] sm:$0xff]
    %v54 = vld [vmem:[%s2 + $0x40] sm:$0xff]
    %v55 = vld [vmem:[%s2 + $0x48] sm:$0xff]
    %v56 = vld [vmem:[%s2 + $0x50] sm:$0xff]
    %v57 = vld [vmem:[%s2 + $0x58] sm:$0xff]
    %v58 = vld [vmem:[%s2 + $0x60] sm:$0xff]
    %v59 = vld [vmem:[%s2 + $0x68] sm:$0xff]
    %v60 = vld [vmem:[%s2 + $0x70] sm:$0xff]
    %v61 = vld [vmem:[%s2 + $0x78] sm:$0xff]
    %63 = vset.pattern.permute.xlu0 0
    %64 = vperm.xlu0 %63, %v46
    %v65 = vpop.permute.xlu0 %64
    %68 = vset.pattern.permute.xlu0 0
    %69 = vperm.xlu0 %68, %v47
    %v70 = vpop.permute.xlu0 %69
    %73 = vset.pattern.permute.xlu0 0
    %74 = vperm.xlu0 %73, %v48
    %v75 = vpop.permute.xlu0 %74
    %78 = vset.pattern.permute.xlu0 0
    %79 = vperm.xlu0 %78, %v49
    %v80 = vpop.permute.xlu0 %79
    %83 = vset.pattern.permute.xlu0 0
    %84 = vperm.xlu0 %83, %v50
    %v85 = vpop.permute.xlu0 %84
    %88 = vset.pattern.permute.xlu0 0
    %89 = vperm.xlu0 %88, %v51
    %v90 = vpop.permute.xlu0 %89
    %93 = vset.pattern.permute.xlu0 0
    %94 = vperm.xlu0 %93, %v52
    %v95 = vpop.permute.xlu0 %94
    %98 = vset.pattern.permute.xlu0 0
    %99 = vperm.xlu0 %98, %v53
    %v100 = vpop.permute.xlu0 %99
    %103 = vset.pattern.permute.xlu0 0
    %104 = vperm.xlu0 %103, %v54
    %v105 = vpop.permute.xlu0 %104
    %108 = vset.pattern.permute.xlu0 0
    %109 = vperm.xlu0 %108, %v55
    %v110 = vpop.permute.xlu0 %109
    %113 = vset.pattern.permute.xlu0 0
    %114 = vperm.xlu0 %113, %v56
    %v115 = vpop.permute.xlu0 %114
    %118 = vset.pattern.permute.xlu0 0
    %119 = vperm.xlu0 %118, %v57
    %v120 = vpop.permute.xlu0 %119
    %123 = vset.pattern.permute.xlu0 0
    %124 = vperm.xlu0 %123, %v58
    %v125 = vpop.permute.xlu0 %124
    %128 = vset.pattern.permute.xlu0 0
    %129 = vperm.xlu0 %128, %v59
    %v130 = vpop.permute.xlu0 %129
    %133 = vset.pattern.permute.xlu0 0
    %134 = vperm.xlu0 %133, %v60
    %v135 = vpop.permute.xlu0 %134
    %138 = vset.pattern.permute.xlu0 0
    %139 = vperm.xlu0 %138, %v61
    %v140 = vpop.permute.xlu0 %139
    %v158 = vunpack.c.l.b16 %v30
    %v159 = vunpack.c.l.b16 %v31
    %v160 = vunpack.c.l.b16 %v32
    %v161 = vunpack.c.l.b16 %v33
    %v162 = vunpack.c.l.b16 %v34
    %v163 = vunpack.c.l.b16 %v35
    %v164 = vunpack.c.l.b16 %v36
    %v165 = vunpack.c.l.b16 %v37
    %v166 = vunpack.c.l.b16 %v38
    %v167 = vunpack.c.l.b16 %v39
    %v168 = vunpack.c.l.b16 %v40
    %v169 = vunpack.c.l.b16 %v41
    %v170 = vunpack.c.l.b16 %v42
    %v171 = vunpack.c.l.b16 %v43
    %v172 = vunpack.c.l.b16 %v44
    %v173 = vunpack.c.l.b16 %v45
    %v174 = vpack.c.b16 %v159, %v158
    %v175 = vpack.c.b16 %v161, %v160
    %v176 = vpack.c.b16 %v163, %v162
    %v177 = vpack.c.b16 %v165, %v164
    %v178 = vpack.c.b16 %v167, %v166
    %v179 = vpack.c.b16 %v169, %v168
    %v180 = vpack.c.b16 %v171, %v170
    %v181 = vpack.c.b16 %v173, %v172
    %v190 = vunpack.c.l.b16 %v22
    %v191 = vunpack.c.l.b16 %v23
    %v192 = vunpack.c.l.b16 %v24
    %v193 = vunpack.c.l.b16 %v25
    %v194 = vunpack.c.l.b16 %v26
    %v195 = vunpack.c.l.b16 %v27
    %v196 = vunpack.c.l.b16 %v28
    %v197 = vunpack.c.l.b16 %v29
    %v198 = vpack.c.b16 %v191, %v190
    %v199 = vpack.c.b16 %v193, %v192
    %v200 = vpack.c.b16 %v195, %v194
    %v201 = vpack.c.b16 %v197, %v196
    %vm206 = vcmask 523264
    %v208 = vsel %vm206, %v174, 0
    %v211 = vsel %vm206, %v175, 0
    %v214 = vsel %vm206, %v176, 0
    %v217 = vsel %vm206, %v177, 0
    %v220 = vsel %vm206, %v178, 0
    %v223 = vsel %vm206, %v179, 0
    %v226 = vsel %vm206, %v180, 0
    %v229 = vsel %vm206, %v181, 0
    %231 = vmatprep.subr.bf16.mxu0 0
    %232 = vmatpush1.bf16.msra.mxu0 %v198
    %233 = vmatprep.subr.bf16.mxu0 0
    %234 = vmatpush1.bf16.msra.mxu0 %v199
    %235 = vmatprep.subr.bf16.mxu0 0
    %236 = vmatpush1.bf16.msra.mxu0 %v200
    %237 = vmatprep.subr.bf16.mxu0 0
    %238 = vmatpush1.bf16.msra.mxu0 %v201
    %239 = vmatprep.subr.bf16.mxu0 0
    %240 = vmatpush1.bf16.msra.mxu0 0
    %241 = vmatprep.subr.bf16.mxu0 0
    %242 = vmatpush1.bf16.msra.mxu0 0
    %243 = vmatprep.subr.bf16.mxu0 0
    %244 = vmatpush1.bf16.msra.mxu0 0
    %245 = vmatprep.subr.bf16.mxu0 0
    %246 = vmatpush1.bf16.msra.mxu0 0
    %247 = vmatprep.subr.bf16.mxu0 0
    %248 = vmatpush1.bf16.msra.mxu0 0
    %249 = vmatprep.subr.bf16.mxu0 0
    %250 = vmatpush1.bf16.msra.mxu0 0
    %251 = vmatprep.subr.bf16.mxu0 0
    %252 = vmatpush1.bf16.msra.mxu0 0
    %253 = vmatprep.subr.bf16.mxu0 0
    %254 = vmatpush1.bf16.msra.mxu0 0
    %255 = vmatprep.subr.bf16.mxu0 0
    %256 = vmatpush1.bf16.msra.mxu0 0
    %257 = vmatprep.subr.bf16.mxu0 0
    %258 = vmatpush1.bf16.msra.mxu0 0
    %259 = vmatprep.subr.bf16.mxu0 0
    %260 = vmatpush1.bf16.msra.mxu0 0
    %261 = vmatprep.subr.bf16.mxu0 0
    %262 = vmatpush1.bf16.msra.mxu0 0
    %263 = vmatprep.mubr.bf16.mxu0 0
    %264 = vmatmul.mubr.bf16.gmra.mrb[0].mxu0 %v208
    %v265 = vpop.f32.mrb[0].mxu0
    %v266 = vadd.f32 %v65, %v265
    %v267 = vpop.f32.mrb[0].mxu0
    %v268 = vpop.f32.mrb[0].mxu0
    %v269 = vadd.f32 %v70, %v268
    %v270 = vpop.f32.mrb[0].mxu0
    %271 = vmatprep.mubr.bf16.mxu0 0
    %272 = vmatmul.mubr.bf16.gmra.mrb[0].mxu0 %v211
    %v273 = vpop.f32.mrb[0].mxu0
    %v274 = vadd.f32 %v75, %v273
    %v275 = vpop.f32.mrb[0].mxu0
    %v276 = vpop.f32.mrb[0].mxu0
    %v277 = vadd.f32 %v80, %v276
    %v278 = vpop.f32.mrb[0].mxu0
    %279 = vmatprep.mubr.bf16.mxu0 0
    %280 = vmatmul.mubr.bf16.gmra.mrb[0].mxu0 %v214
    %v281 = vpop.f32.mrb[0].mxu0
    %v282 = vadd.f32 %v85, %v281
    %v283 = vpop.f32.mrb[0].mxu0
    %v284 = vpop.f32.mrb[0].mxu0
    %v285 = vadd.f32 %v90, %v284
    %v286 = vpop.f32.mrb[0].mxu0
    %287 = vmatprep.mubr.bf16.mxu0 0
    %288 = vmatmul.mubr.bf16.gmra.mrb[0].mxu0 %v217
    %v289 = vpop.f32.mrb[0].mxu0
    %v290 = vadd.f32 %v95, %v289
    %v291 = vpop.f32.mrb[0].mxu0
    %v292 = vpop.f32.mrb[0].mxu0
    %v293 = vadd.f32 %v100, %v292
    %v294 = vpop.f32.mrb[0].mxu0
    %295 = vmatprep.mubr.bf16.mxu0 0
    %296 = vmatmul.mubr.bf16.gmra.mrb[0].mxu0 %v220
    %v297 = vpop.f32.mrb[0].mxu0
    %v298 = vadd.f32 %v105, %v297
    %v299 = vpop.f32.mrb[0].mxu0
    %v300 = vpop.f32.mrb[0].mxu0
    %v301 = vadd.f32 %v110, %v300
    %v302 = vpop.f32.mrb[0].mxu0
    %303 = vmatprep.mubr.bf16.mxu0 0
    %304 = vmatmul.mubr.bf16.gmra.mrb[0].mxu0 %v223
    %v305 = vpop.f32.mrb[0].mxu0
    %v306 = vadd.f32 %v115, %v305
    %v307 = vpop.f32.mrb[0].mxu0
    %v308 = vpop.f32.mrb[0].mxu0
    %v309 = vadd.f32 %v120, %v308
    %v310 = vpop.f32.mrb[0].mxu0
    %311 = vmatprep.mubr.bf16.mxu0 0
    %312 = vmatmul.mubr.bf16.gmra.mrb[0].mxu0 %v226
    %v313 = vpop.f32.mrb[0].mxu0
    %v314 = vadd.f32 %v125, %v313
    %v315 = vpop.f32.mrb[0].mxu0
    %v316 = vpop.f32.mrb[0].mxu0
    %v317 = vadd.f32 %v130, %v316
    %v318 = vpop.f32.mrb[0].mxu0
    %319 = vmatprep.mubr.bf16.mxu0 0
    %320 = vmatmul.mubr.bf16.gmra.mrb[0].mxu0 %v229
    %v321 = vpop.f32.mrb[0].mxu0
    %v322 = vadd.f32 %v135, %v321
    %v323 = vpop.f32.mrb[0].mxu0
    %v324 = vpop.f32.mrb[0].mxu0
    %v325 = vadd.f32 %v140, %v324
    %v326 = vpop.f32.mrb[0].mxu0
    %327 = vdwg.mxu0
    %v328 = vmax.f32 %v266, 0.0
    %v329 = vmax.f32 %v269, 0.0
    %v330 = vmax.f32 %v274, 0.0
    %v331 = vmax.f32 %v277, 0.0
    %v332 = vmax.f32 %v282, 0.0
    %v333 = vmax.f32 %v285, 0.0
    %v334 = vmax.f32 %v290, 0.0
    %v335 = vmax.f32 %v293, 0.0
    %v336 = vmax.f32 %v298, 0.0
    %v337 = vmax.f32 %v301, 0.0
    %v338 = vmax.f32 %v306, 0.0
    %v339 = vmax.f32 %v309, 0.0
    %v340 = vmax.f32 %v314, 0.0
    %v341 = vmax.f32 %v317, 0.0
    %v342 = vmax.f32 %v322, 0.0
    %v343 = vmax.f32 %v325, 0.0
    %v344 = vld [vmem:[%s3] sm:$0xf]
    %v345 = vld [vmem:[%s3 + $0x4] sm:$0xf]
    %v346 = vld [vmem:[%s3 + $0x8] sm:$0xf]
    %v347 = vld [vmem:[%s3 + $0xc] sm:$0xf]
    %v348 = vld [vmem:[%s3 + $0x10] sm:$0xf]
    %v349 = vld [vmem:[%s3 + $0x14] sm:$0xf]
    %v350 = vld [vmem:[%s3 + $0x18] sm:$0xf]
    %v351 = vld [vmem:[%s3 + $0x1c] sm:$0xf]
    %v352 = vpack.c.bf16 %v329, %v328
    %v353 = vpack.c.bf16 %v331, %v330
    %v354 = vpack.c.bf16 %v333, %v332
    %v355 = vpack.c.bf16 %v335, %v334
    %v356 = vpack.c.bf16 %v337, %v336
    %v357 = vpack.c.bf16 %v339, %v338
    %v358 = vpack.c.bf16 %v341, %v340
    %v359 = vpack.c.bf16 %v343, %v342
    %v360 = vld [vmem:[%s4] sm:$0xff]
    %v361 = vld [vmem:[%s4 + $0x8] sm:$0xff]
    %v362 = vld [vmem:[%s4 + $0x10] sm:$0xff]
    %v363 = vld [vmem:[%s4 + $0x18] sm:$0xff]
    %v364 = vld [vmem:[%s4 + $0x20] sm:$0xff]
    %v365 = vld [vmem:[%s4 + $0x28] sm:$0xff]
    %v366 = vld [vmem:[%s4 + $0x30] sm:$0xff]
    %v367 = vld [vmem:[%s4 + $0x38] sm:$0xff]
    %369 = vset.pattern.permute.xlu0 0
    %370 = vperm.xlu0 %369, %v360
    %v371 = vpop.permute.xlu0 %370
    %374 = vset.pattern.permute.xlu0 0
    %375 = vperm.xlu0 %374, %v361
    %v376 = vpop.permute.xlu0 %375
    %379 = vset.pattern.permute.xlu0 0
    %380 = vperm.xlu0 %379, %v362
    %v381 = vpop.permute.xlu0 %380
    %384 = vset.pattern.permute.xlu0 0
    %385 = vperm.xlu0 %384, %v363
    %v386 = vpop.permute.xlu0 %385
    %389 = vset.pattern.permute.xlu0 0
    %390 = vperm.xlu0 %389, %v364
    %v391 = vpop.permute.xlu0 %390
    %394 = vset.pattern.permute.xlu0 0
    %395 = vperm.xlu0 %394, %v365
    %v396 = vpop.permute.xlu0 %395
    %399 = vset.pattern.permute.xlu0 0
    %400 = vperm.xlu0 %399, %v366
    %v401 = vpop.permute.xlu0 %400
    %404 = vset.pattern.permute.xlu0 0
    %405 = vperm.xlu0 %404, %v367
    %v406 = vpop.permute.xlu0 %405
    %v416 = vunpack.c.l.b16 %v344
    %v417 = vunpack.c.l.b16 %v345
    %v418 = vunpack.c.l.b16 %v346
    %v419 = vunpack.c.l.b16 %v347
    %v420 = vunpack.c.l.b16 %v348
    %v421 = vunpack.c.l.b16 %v349
    %v422 = vunpack.c.l.b16 %v350
    %v423 = vunpack.c.l.b16 %v351
    %v424 = vpack.c.b16 %v417, %v416
    %v425 = vpack.c.b16 %v419, %v418
    %v426 = vpack.c.b16 %v421, %v420
    %v427 = vpack.c.b16 %v423, %v422
    %432 = vmatprep.subr.bf16.mxu0 0
    %433 = vmatpush1.bf16.msra.mxu0 %v352
    %434 = vmatprep.subr.bf16.mxu0 0
    %435 = vmatpush1.bf16.msra.mxu0 %v353
    %436 = vmatprep.subr.bf16.mxu0 0
    %437 = vmatpush1.bf16.msra.mxu0 %v354
    %438 = vmatprep.subr.bf16.mxu0 0
    %439 = vmatpush1.bf16.msra.mxu0 %v355
    %440 = vmatprep.subr.bf16.mxu0 0
    %441 = vmatpush1.bf16.msra.mxu0 %v356
    %442 = vmatprep.subr.bf16.mxu0 0
    %443 = vmatpush1.bf16.msra.mxu0 %v357
    %444 = vmatprep.subr.bf16.mxu0 0
    %445 = vmatpush1.bf16.msra.mxu0 %v358
    %446 = vmatprep.subr.bf16.mxu0 0
    %447 = vmatpush1.bf16.msra.mxu0 %v359
    %448 = vmatprep.subr.bf16.mxu0 0
    %449 = vmatpush1.bf16.msra.mxu0 0
    %450 = vmatprep.subr.bf16.mxu0 0
    %451 = vmatpush1.bf16.msra.mxu0 0
    %452 = vmatprep.subr.bf16.mxu0 0
    %453 = vmatpush1.bf16.msra.mxu0 0
    %454 = vmatprep.subr.bf16.mxu0 0
    %455 = vmatpush1.bf16.msra.mxu0 0
    %456 = vmatprep.subr.bf16.mxu0 0
    %457 = vmatpush1.bf16.msra.mxu0 0
    %458 = vmatprep.subr.bf16.mxu0 0
    %459 = vmatpush1.bf16.msra.mxu0 0
    %460 = vmatprep.subr.bf16.mxu0 0
    %461 = vmatpush1.bf16.msra.mxu0 0
    %462 = vmatprep.subr.bf16.mxu0 0
    %463 = vmatpush1.bf16.msra.mxu0 0
    %464 = vmatprep.mubr.bf16.mxu0 0
    %465 = vmatmul.mubr.bf16.gmra.mrb[0].mxu0 %v424
    %v466 = vpop.f32.mrb[0].mxu0
    %v467 = vadd.f32 %v371, %v466
    %v468 = vpop.f32.mrb[0].mxu0
    %v469 = vpop.f32.mrb[0].mxu0
    %v470 = vadd.f32 %v376, %v469
    %v471 = vpop.f32.mrb[0].mxu0
    %472 = vmatprep.mubr.bf16.mxu0 0
    %473 = vmatmul.mubr.bf16.gmra.mrb[0].mxu0 %v425
    %v474 = vpop.f32.mrb[0].mxu0
    %v475 = vadd.f32 %v381, %v474
    %v476 = vpop.f32.mrb[0].mxu0
    %v477 = vpop.f32.mrb[0].mxu0
    %v478 = vadd.f32 %v386, %v477
    %v479 = vpop.f32.mrb[0].mxu0
    %480 = vmatprep.mubr.bf16.mxu0 0
    %481 = vmatmul.mubr.bf16.gmra.mrb[0].mxu0 %v426
    %v482 = vpop.f32.mrb[0].mxu0
    %v483 = vadd.f32 %v391, %v482
    %v484 = vpop.f32.mrb[0].mxu0
    %v485 = vpop.f32.mrb[0].mxu0
    %v486 = vadd.f32 %v396, %v485
    %v487 = vpop.f32.mrb[0].mxu0
    %488 = vmatprep.mubr.bf16.mxu0 0
    %489 = vmatmul.mubr.bf16.gmra.mrb[0].mxu0 %v427
    %v490 = vpop.f32.mrb[0].mxu0
    %v491 = vadd.f32 %v401, %v490
    %v492 = vpop.f32.mrb[0].mxu0
    %v493 = vpop.f32.mrb[0].mxu0
    %v494 = vadd.f32 %v406, %v493
    %v495 = vpop.f32.mrb[0].mxu0
    %496 = vdwg.mxu0
    %v497 = vmax.f32 %v467, 0.0
    %v498 = vmax.f32 %v470, 0.0
    %v499 = vmax.f32 %v475, 0.0
    %v500 = vmax.f32 %v478, 0.0
    %v501 = vmax.f32 %v483, 0.0
    %v502 = vmax.f32 %v486, 0.0
    %v503 = vmax.f32 %v491, 0.0
    %v504 = vmax.f32 %v494, 0.0
    %v505 = vmul.f32 %v497, %v501
    %v506 = vmul.f32 %v498, %v502
    %v507 = vmul.f32 %v499, %v503
    %v508 = vmul.f32 %v500, %v504
    %v509 = vadd.f32 %v505, %v506
    %v510 = vadd.f32 %v509, %v507
    %v511 = vadd.f32 %v510, %v508
    %v512 = vrot.slane %v511, 4
    %v513 = vadd.f32 %v511, %v512
    %v514 = vrot.slane %v513, 2
    %v515 = vadd.f32 %v513, %v514
    %v516 = vrot.slane %v515, 1
    %v517 = vadd.f32 %v515, %v516
    %v518 = vmul.f32 %v497, %v497
    %v519 = vmul.f32 %v498, %v498
    %v520 = vmul.f32 %v499, %v499
    %v521 = vmul.f32 %v500, %v500
    %v522 = vadd.f32 %v518, %v519
    %v523 = vadd.f32 %v522, %v520
    %v524 = vadd.f32 %v523, %v521
    %v525 = vrot.slane %v524, 4
    %v526 = vadd.f32 %v524, %v525
    %v527 = vrot.slane %v526, 2
    %v528 = vadd.f32 %v526, %v527
    %v529 = vrot.slane %v528, 1
    %v530 = vadd.f32 %v528, %v529
    %v531 = vmul.f32 %v501, %v501
    %v532 = vmul.f32 %v502, %v502
    %v533 = vmul.f32 %v503, %v503
    %v534 = vmul.f32 %v504, %v504
    %v535 = vadd.f32 %v531, %v532
    %v536 = vadd.f32 %v535, %v533
    %v537 = vadd.f32 %v536, %v534
    %v538 = vrot.slane %v537, 4
    %v539 = vadd.f32 %v537, %v538
    %v540 = vrot.slane %v539, 2
    %v541 = vadd.f32 %v539, %v540
    %v542 = vrot.slane %v541, 1
    %v543 = vadd.f32 %v541, %v542
    %v544 = vmax.f32 %v530, 1e-16
    %v545 = vrsqrt.pop %v544
    %v546 = vmul.f32 %v517, %v545
    %v547 = vmax.f32 %v543, 1e-16
    %v548 = vrsqrt.pop %v547
    %v549 = vmul.f32 %v546, %v548
    %v550 = vxor.u32 %v549, 2147483648
    %v551 = vmul.f32 %v550, 1.442695
    %v552 = vpow.pop %v551
    %v553 = vadd.f32 %v552, 1.0
    %v554 = vrcp.pop %v553
    %v555 = vmul.f32 1.0, %v554
    %556 = vst [vmem:[#allocation2] sm:$0x1] %v555
    // Predicated region
    $region22: #{tpu_custom_call.1} parent=1 // pred_check
      _
    $region23: #{tpu_custom_call.1} parent=1 // pred_check_branch
      %558 = sbr.rel (0) target = $region25
    $region24: #{tpu_custom_call.1} parent=1 // pred_region
      %s560 = ssub.s32 16, 16
      %561 = vsyncadd [#allocation3], %s560
      %s563 = sshll.u32 [#allocation2], 4
      %s564 = int_to_ptr.vmem [resolvable:$true] %s563
      %566 = dma.vmem_to_hbm [thread:$0]  %s564, 16, %s5, [#allocation3]
    $region25: #{tpu_custom_call.1} parent=1 // pred_fallthru
      _
    // Predicated region
    $region26: #{tpu_custom_call.1} parent=1 // pred_check
      _
    $region27: #{tpu_custom_call.1} parent=1 // pred_check_branch
      %568 = sbr.rel (0) target = $region29
    $region28: #{tpu_custom_call.1} parent=1 // pred_region
      %569 = dma.done [#allocation3], 16
    $region29: #{tpu_custom_call.1} parent=1 // pred_fallthru
      _
    %570 = vsyncpa [#allocation3], 1

</llo_original>
